<compile_context>
chip_gen: v5e
topology: v5e:2x2
jax: 0.10.0
libtpu: 0.0.40
codegen_flags: <defaults>
</compile_context>

<pallas_src>
import numpy as np
import jax
import jax.numpy as jnp
from jax import lax
from jax.experimental import pallas as pl
from jax.experimental.pallas import tpu as pltpu

EPS = 1e-5                     # PyTorch BatchNorm1d default eps
LANE = 128                     # TPU lane width; channel axes padded to this
VMEM_LIMIT = 48 * 1024 * 1024  # explicit scoped-VMEM budget (safe on v5e/v6e/v7x)


def _round_up(x, m):
    return (x + m - 1) // m * m


def _pad_last(a, target):
    pad = target - a.shape[-1]
    if pad == 0:
        return a
    widths = [(0, 0)] * (a.ndim - 1) + [(0, pad)]
    return jnp.pad(a, widths)


# ----------------------------------------------------------------------------
# Pass 1: per-channel sum / sum-of-squares of x  (BN1 batch statistics)
# ----------------------------------------------------------------------------
def _channel_stats_kernel(x_ref, st_ref):
    # x_ref: (L, C) bf16 for one batch element; st_ref: (2, C) f32 accumulator.
    @pl.when(pl.program_id(0) == 0)
    def _init():
        st_ref[...] = jnp.zeros_like(st_ref)

    xv = x_ref[...].astype(jnp.float32)
    st_ref[...] += jnp.concatenate(
        [jnp.sum(xv, axis=0, keepdims=True),
         jnp.sum(xv * xv, axis=0, keepdims=True)], axis=0)


# ----------------------------------------------------------------------------
# Pass 2: BN1(affine) + ReLU + conv1 (k=5, s=1, p=2) as one im2col matmul.
#         Also accumulates BN2 batch statistics of the f32 conv output.
# ----------------------------------------------------------------------------
def _bn1_relu_conv1_kernel(scale_ref, shift_ref, x_ref, w_ref, y_ref, st_ref):
    L, Ci = x_ref.shape
    K = w_ref.shape[0] // Ci          # 5
    P = (K - 1) // 2                  # 2

    @pl.when(pl.program_id(0) == 0)
    def _init():
        st_ref[...] = jnp.zeros_like(st_ref)

    # BN1 folded into a single affine (scale/shift precomputed from global stats)
    h = jnp.maximum(
        x_ref[...].astype(jnp.float32) * scale_ref[...] + shift_ref[...], 0.0)

    # zero only the halo rows; no scratch buffers, no full memset
    zrows = jnp.zeros((P, Ci), jnp.float32)
    hp = jnp.concatenate([zrows, h, zrows], axis=0)               # (L + 2P, Ci)

    # im2col: tap-major lane concat -> a single MXU matmul with contraction K*Ci
    a = jnp.concatenate(
        [hp[t:t + L, :].astype(jnp.bfloat16) for t in range(K)], axis=1)
    acc = jnp.dot(a, w_ref[...], preferred_element_type=jnp.float32)  # (L, Co)

    st_ref[...] += jnp.concatenate(
        [jnp.sum(acc, axis=0, keepdims=True),
         jnp.sum(acc * acc, axis=0, keepdims=True)], axis=0)
    y_ref[...] = acc.astype(y_ref.dtype)


# ----------------------------------------------------------------------------
# Pass 3: BN2(affine) + ReLU + conv2 (k=3, s=2, p=1, even outputs only)
#         + 1x1 stride-2 shortcut + fused (conv2 + shortcut) bias + residual add
# ----------------------------------------------------------------------------
def _bn2_relu_conv2_residual_kernel(scale_ref, shift_ref, bias_ref,
                                    y_ref, x_ref, w2_ref, wd_ref, out_ref):
    L, Co = y_ref.shape
    Ci = x_ref.shape[-1]
    Lo = out_ref.shape[0]                                         # L // 2

    h = jnp.maximum(
        y_ref[...].astype(jnp.float32) * scale_ref[...] + shift_ref[...], 0.0)

    # stride-2 path: only the even output positions are ever computed.
    h3 = h.reshape(Lo, 2, Co)
    he, ho = h3[:, 0, :], h3[:, 1, :]                 # h[2*lo], h[2*lo + 1]
    ho_m1 = jnp.concatenate(                          # h[2*lo - 1], zero at lo=0
        [jnp.zeros((1, Co), jnp.float32), ho[:Lo - 1, :]], axis=0)
    a2 = jnp.concatenate([ho_m1, he, ho], axis=1).astype(jnp.bfloat16)  # (Lo, 3*Co)
    acc = jnp.dot(a2, w2_ref[...], preferred_element_type=jnp.float32)

    # 1x1 stride-2 shortcut on the raw input (even positions only)
    xe = x_ref[...].astype(jnp.float32).reshape(Lo, 2, Ci)[:, 0, :]
    acc = acc + jnp.dot(xe.astype(jnp.bfloat16), wd_ref[...],
                        preferred_element_type=jnp.float32)

    out_ref[...] = (acc + bias_ref[...]).astype(out_ref.dtype)


# ----------------------------------------------------------------------------
# Wrapper
# ----------------------------------------------------------------------------
def residual_block_forward(x_ncl, params):
    """x_ncl: (N, Cin, L) float32 in PyTorch NCL layout. Returns (N, Cout, L//2)."""
    N, Cin, L = x_ncl.shape
    assert L % 2 == 0, "kernel assumes an even input length"
    Cout = params["conv1_w"].shape[0]
    Lo = L // 2
    Ci = _round_up(Cin, LANE)
    Co = _round_up(Cout, LANE)
    K1 = params["conv1_w"].shape[2]
    K2 = params["conv2_w"].shape[2]

    # ---- layout: NLC, channels zero-padded to a lane multiple, bf16 activations
    x_nlc = jnp.transpose(x_ncl, (0, 2, 1)).astype(jnp.float32)
    x_p = _pad_last(x_nlc, Ci).astype(jnp.bfloat16)                    # (N, L, Ci)

    # conv weights -> (K, C_in, C_out), zero-padded, flattened tap-major (im2col)
    w1 = _pad_last(jnp.transpose(params["conv1_w"], (2, 1, 0)), Co)    # (K1,Cin,Co)
    w1 = jnp.pad(w1, ((0, 0), (0, Ci - Cin), (0, 0)))                  # (K1,Ci,Co)
    w1f = w1.reshape(K1 * Ci, Co).astype(jnp.bfloat16)
    w2 = _pad_last(jnp.transpose(params["conv2_w"], (2, 1, 0)), Co)    # (K2,Cout,Co)
    w2 = jnp.pad(w2, ((0, 0), (0, Co - Cout), (0, 0)))                 # (K2,Co,Co)
    w2f = w2.reshape(K2 * Co, Co).astype(jnp.bfloat16)
    wd = _pad_last(jnp.transpose(params["ds_w"], (2, 1, 0)), Co)[0]    # (Cin,Co)
    wd = jnp.pad(wd, ((0, Ci - Cin), (0, 0))).astype(jnp.bfloat16)     # (Ci,Co)

    g1 = _pad_last(params["bn1_g"].reshape(1, Cin), Ci)
    b1 = _pad_last(params["bn1_b"].reshape(1, Cin), Ci)
    g2 = _pad_last(params["bn2_g"].reshape(1, Cout), Co)
    b2 = _pad_last(params["bn2_b"].reshape(1, Cout), Co)
    bias = _pad_last((params["conv2_b"] + params["ds_b"]).reshape(1, Cout), Co)

    cp_arb = pltpu.CompilerParams(dimension_semantics=("arbitrary",),
                                  vmem_limit_bytes=VMEM_LIMIT)
    cp_par = pltpu.CompilerParams(dimension_semantics=("parallel",),
                                  vmem_limit_bytes=VMEM_LIMIT)

    x_block = pl.BlockSpec((None, L, Ci), lambda n: (n, 0, 0))
    y_block = pl.BlockSpec((None, L, Co), lambda n: (n, 0, 0))
    out_block = pl.BlockSpec((None, Lo, Co), lambda n: (n, 0, 0))

    def rep(shape):  # grid-invariant (resident) full-array block
        nd = len(shape)
        return pl.BlockSpec(shape, lambda n, _nd=nd: (0,) * _nd)

    # ---- pass 1: BN1 batch statistics (sum / sumsq per channel) ----
    st1 = pl.pallas_call(
        _channel_stats_kernel,
        out_shape=jax.ShapeDtypeStruct((2, Ci), jnp.float32),
        grid=(N,),
        in_specs=[x_block],
        out_specs=rep((2, Ci)),
        compiler_params=cp_arb,
    )(x_p)

    n_elem = float(N * L)
    mean1 = st1[0] / n_elem
    var1 = jnp.maximum(st1[1] / n_elem - mean1 * mean1, 0.0)
    rstd1 = lax.rsqrt(var1 + EPS)
    scale1 = (g1 * rstd1).astype(jnp.float32)
    shift1 = (b1 - mean1 * g1 * rstd1).astype(jnp.float32)

    # ---- pass 2: BN1 + ReLU + conv1 (single matmul) + BN2 statistics ----
    y1, st2 = pl.pallas_call(
        _bn1_relu_conv1_kernel,
        out_shape=(jax.ShapeDtypeStruct((N, L, Co), jnp.bfloat16),
                   jax.ShapeDtypeStruct((2, Co), jnp.float32)),
        grid=(N,),
        in_specs=[rep((1, Ci)), rep((1, Ci)), x_block, rep((K1 * Ci, Co))],
        out_specs=(y_block, rep((2, Co))),
        compiler_params=cp_arb,
    )(scale1, shift1, x_p, w1f)

    mean2 = st2[0] / n_elem
    var2 = jnp.maximum(st2[1] / n_elem - mean2 * mean2, 0.0)
    rstd2 = lax.rsqrt(var2 + EPS)
    scale2 = (g2 * rstd2).astype(jnp.float32)
    shift2 = (b2 - mean2 * g2 * rstd2).astype(jnp.float32)

    # ---- pass 3: BN2 + ReLU + conv2 (even only) + shortcut + residual add ----
    out_p = pl.pallas_call(
        _bn2_relu_conv2_residual_kernel,
        out_shape=jax.ShapeDtypeStruct((N, Lo, Co), jnp.float32),
        grid=(N,),
        in_specs=[rep((1, Co)), rep((1, Co)), rep((1, Co)),
                  y_block, x_block, rep((K2 * Co, Co)), rep((Ci, Co))],
        out_specs=out_block,
        compiler_params=cp_par,
    )(scale2, shift2, bias, y1, x_p, w2f, wd)

    # drop the channel padding, back to PyTorch NCL layout
    return jnp.transpose(out_p[:, :, :Cout], (0, 2, 1))


# ----------------------------------------------------------------------------
# Parameters + pure-JAX reference (training-mode BN) for self-check
# ----------------------------------------------------------------------------
def init_params(key, cin, cout):
    ks = jax.random.split(key, 8)
    p = {
        "bn1_g": 1.0 + 0.1 * jax.random.normal(ks[0], (cin,)),
        "bn1_b": 0.1 * jax.random.normal(ks[1], (cin,)),
        "conv1_w": 0.1 * jax.random.normal(ks[2], (cout, cin, 5)),
        "bn2_g": 1.0 + 0.1 * jax.random.normal(ks[3], (cout,)),
        "bn2_b": 0.1 * jax.random.normal(ks[4], (cout,)),
        "conv2_w": 0.1 * jax.random.normal(ks[5], (cout, cout, 3)),
        "conv2_b": 0.1 * jax.random.normal(ks[6], (cout,)),
        "ds_w": 0.1 * jax.random.normal(ks[7], (cout, cin, 1)),
        "ds_b": jnp.zeros((cout,), jnp.float32),
    }
    return jax.tree_util.tree_map(lambda a: a.astype(jnp.float32), p)


def reference_forward(x, p):
    """Pure-JAX reference mirroring the PyTorch forward (training-mode BN)."""
    def bn(h, g, b):
        m = jnp.mean(h, axis=(0, 2), keepdims=True)
        v = jnp.mean((h - m) ** 2, axis=(0, 2), keepdims=True)
        return (h - m) / jnp.sqrt(v + EPS) * g.reshape(1, -1, 1) + b.reshape(1, -1, 1)

    def conv1d(h, w, stride, pad):
        return lax.conv_general_dilated(
            h, w, window_strides=(stride,), padding=[(pad, pad)],
            dimension_numbers=("NCH", "OIH", "NCH"))

    out = jnp.maximum(bn(x, p["bn1_g"], p["bn1_b"]), 0.0)
    out = conv1d(out, p["conv1_w"], 1, 2)
    out = jnp.maximum(bn(out, p["bn2_g"], p["bn2_b"]), 0.0)
    out = conv1d(out, p["conv2_w"], 2, 1) + p["conv2_b"].reshape(1, -1, 1)
    sc = conv1d(x, p["ds_w"], 2, 0) + p["ds_b"].reshape(1, -1, 1)
    return out + sc


if __name__ == "__main__":
    key = jax.random.PRNGKey(0)
    kx, kp = jax.random.split(key)
    N, Cin, Cout, L = 2, 4, 8, 16
    x = jax.random.normal(kx, (N, Cin, L), jnp.float32)
    params = init_params(kp, Cin, Cout)

    out = residual_block_forward(x, params)
    out = jax.block_until_ready(out)

    ref = reference_forward(x, params)
    assert out.shape == (N, Cout, L // 2)
    np.testing.assert_allclose(np.asarray(out), np.asarray(ref),
                               rtol=2e-2, atol=2e-2)
    print("KERNEL_OK")
</pallas_src>

<mosaic_0001>
module attributes {stable_mosaic.version = 11 : i64} {
  func.func @_channel_stats_kernel(%arg0: i32, %arg1: memref<1x16x128xbf16, #tpu.memory_space<vmem>>, %arg2: memref<2x128xf32, #tpu.memory_space<vmem>>) attributes {dimension_semantics = [#tpu.dimension_semantics<arbitrary>], iteration_bounds = array<i64: 2>, scalar_prefetch = 0 : i64, scratch_operands = 0 : i64, tpu.core_type = #tpu.core_type<tc>, window_params = [{transform_indices = @transform_0, window_bounds = array<i64: 1, 16, 128>}, {pipeline_mode = #tpu.pipeline_mode<synchronous>, transform_indices = @transform_1, window_bounds = array<i64: 2, 128>}]} {
    %c0_i32 = arith.constant 0 : i32
    %0 = arith.cmpi eq, %arg0, %c0_i32 : i32
    %1 = arith.extui %0 : i1 to i32
    %c0_i32_0 = arith.constant 0 : i32
    %2 = arith.cmpi ne, %1, %c0_i32_0 : i32
    scf.if %2 {
      %cst_8 = arith.constant 0.000000e+00 : f32
      %15 = vector.broadcast %cst_8 : f32 to vector<2x128xf32>
      %c0_9 = arith.constant 0 : index
      %c0_10 = arith.constant 0 : index
      %16 = vector.load %arg2[%c0_9, %c0_10] : memref<2x128xf32, #tpu.memory_space<vmem>>, vector<2x128xf32>
      tpu.vector_store %arg2[%c0_9, %c0_10], %15 {strides = array<i32>} : memref<2x128xf32, #tpu.memory_space<vmem>>, vector<2x128xf32>,
    } else {
    }
    %c0 = arith.constant 0 : index
    %c0_1 = arith.constant 0 : index
    %c0_2 = arith.constant 0 : index
    %3 = vector.load %arg1[%c0, %c0_1, %c0_2] : memref<1x16x128xbf16, #tpu.memory_space<vmem>>, vector<1x16x128xbf16>
    %4 = vector.shape_cast %3 : vector<1x16x128xbf16> to vector<16x128xbf16>
    %5 = arith.extf %4 : vector<16x128xbf16> to vector<16x128xf32>
    %c0_3 = arith.constant 0 : index
    %c0_4 = arith.constant 0 : index
    %6 = vector.load %arg2[%c0_3, %c0_4] : memref<2x128xf32, #tpu.memory_space<vmem>>, vector<2x128xf32>
    %cst = arith.constant dense<0.000000e+00> : vector<128xf32>
    %7 = vector.multi_reduction <add>, %5, %cst [0] : vector<16x128xf32> to vector<128xf32>
    %8 = vector.shape_cast %7 : vector<128xf32> to vector<1x128xf32>
    %9 = arith.mulf %5, %5 : vector<16x128xf32>
    %cst_5 = arith.constant dense<0.000000e+00> : vector<128xf32>
    %10 = vector.multi_reduction <add>, %9, %cst_5 [0] : vector<16x128xf32> to vector<128xf32>
    %11 = vector.shape_cast %10 : vector<128xf32> to vector<1x128xf32>
    %12 = tpu.concatenate %8, %11 in 0 : vector<1x128xf32>, vector<1x128xf32> -> vector<2x128xf32>
    %13 = arith.addf %6, %12 : vector<2x128xf32>
    %c0_6 = arith.constant 0 : index
    %c0_7 = arith.constant 0 : index
    %14 = vector.load %arg2[%c0_6, %c0_7] : memref<2x128xf32, #tpu.memory_space<vmem>>, vector<2x128xf32>
    tpu.vector_store %arg2[%c0_6, %c0_7], %13 {strides = array<i32>} : memref<2x128xf32, #tpu.memory_space<vmem>>, vector<2x128xf32>,
    return
  }
  func.func @transform_0(%arg0: i32) -> (i32, i32, i32) {
    %c0_i32 = arith.constant 0 : i32
    %c0_i32_0 = arith.constant 0 : i32
    %c0_i32_1 = arith.constant 0 : i32
    return %arg0, %c0_i32, %c0_i32_0 : i32, i32, i32
  }
  func.func @transform_1(%arg0: i32) -> (i32, i32) {
    %c0_i32 = arith.constant 0 : i32
    %c0_i32_0 = arith.constant 0 : i32
    %c0_i32_1 = arith.constant 0 : i32
    return %c0_i32, %c0_i32_0 : i32, i32
  }
}

</mosaic_0001>

<llo_original>
// kernel: tpu_custom_call.1
$region0: #{tpu_custom_call.1}
  #allocation0 [shape = 'u32[]', space=smem, size = 0x4, offset = 0x4, fixed_abs, tag = 'smem constant byte address 0x4 - core index']
  #allocation1 [shape = 'u32[72,128]{1,0:T(1,128)}', space=vmem, size = 0x9000, scoped, tag = 'internal scratch']
  %s0 = inlined_call_operand.hbm [shape: bf16[2,16,128], index: 0, kind: input, shape index: {}]
  %s1 = inlined_call_operand.hbm [shape: f32[2,128], index: 1, kind: output, shape index: {}]
  %s2 = sld [smem:[#allocation0]]
  $region45: #{tpu_custom_call.1} parent=0
    _
  %s4 = ssub.s32 1, %s2
  %s5 = scalar_select 0, %s4, %s2
  $region1: #{tpu_custom_call.1} parent=0
    #allocation2 [shape = 'u8[8192]{0}', space=vmem, size = 0x2000, scoped, tag = 'input window, operand 0']
    #allocation3 [shape = 's32[2]{0}', space=sflag, size = 0x8, scoped, tag = 'scoped memory for tpu_custom_call.1']
    #allocation4 [shape = 's32[2]{0}', space=sflag, size = 0x8, scoped, tag = 'scoped memory for tpu_custom_call.1']
    #allocation5 [shape = 'u8[1024]{0}', space=vmem, size = 0x400, scoped, tag = 'output window, operand 0, single buffered']
    %6 = vsyncpa [#allocation3], 0
    %s7 = scalar_lea.sflag [#allocation3], 1
    %8 = vsyncpa %s7, 0
    %9 = vsyncpa [#allocation4], 0
    loop: start=0, step=1, limit=4
    $region2: #{tpu_custom_call.1} parent=1 // loop_pre_header
      _
    $region3: #{tpu_custom_call.1} parent=1 // loop_header
      %s11 = sphi 0, %s15
      %p12 = scmp.ge.s32.totalorder %s11, 4
      %s21 = sphi 0, %s23
      %s24 = sphi 0, %s21
      %s25 = sphi 0, %s24
      %s41 = sphi 0, %s25
      %s45 = sphi 0, %s45
      %s47 = sphi 0, %s45
      %s48 = sphi 0, %s47
      %s62 = sphi 0, %s48
    $region4: #{tpu_custom_call.1} parent=1 // loop_header_branch
      %14 = sbr.rel (%p12) target = $region8
    $region5: #{tpu_custom_call.1} parent=1 // loop_body
      %s16 = ssub.s32 %s11, 1
      %s17 = ssub.s32 %s11, 2
      %s18 = sadd.s32 %s11, 1
      %s19 = ssub.s32 %s11, %s18
      %p20 = scmp.eq.s32.totalorder %s19, 0
      %s22 = sadd.s32 %s21, 1
      %s23 = scalar_select %p20, %s21, %s22
      %p26 = pneg %p20
      %p27 = scmp.eq.s32.totalorder %s11, 1
      %p28 = por %p26, %p27
      %p29 = scmp.ne.s32.totalorder %s21, %s24
      %p30 = scmp.eq.s32.totalorder %s11, 0
      %p31 = por %p29, %p30
      %p32 = scmp.ne.s32.totalorder %s21, %s24
      %p33 = scmp.eq.s32.totalorder %s16, 1
      %p34 = por %p32, %p33
      %p35 = scmp.ne.s32.totalorder %s24, %s25
      %p36 = scmp.eq.s32.totalorder %s16, 0
      %p37 = por %p35, %p36
      %p38 = scmp.ne.s32.totalorder %s24, %s25
      %p39 = scmp.eq.s32.totalorder %s17, 1
      %p40 = por %p38, %p39
      %p42 = scmp.ne.s32.totalorder %s25, %s41
      %p43 = scmp.eq.s32.totalorder %s17, 0
      %p44 = por %p42, %p43
      %s46 = sadd.s32 %s45, 1
      %p49 = scmp.eq.s32.totalorder %s11, 1
      %p50 = scmp.ne.s32.totalorder %s45, %s47
      %p51 = scmp.eq.s32.totalorder %s11, 0
      %p52 = por %p50, %p51
      %p53 = scmp.ne.s32.totalorder %s45, %s47
      %p54 = scmp.eq.s32.totalorder %s16, 1
      %p55 = por %p53, %p54
      %p56 = scmp.ne.s32.totalorder %s47, %s48
      %p57 = scmp.eq.s32.totalorder %s16, 0
      %p58 = por %p56, %p57
      %p59 = scmp.ne.s32.totalorder %s47, %s48
      %p60 = scmp.eq.s32.totalorder %s17, 1
      %p61 = por %p59, %p60
      %p63 = scmp.ne.s32.totalorder %s48, %s62
      %p64 = scmp.eq.s32.totalorder %s17, 0
      %p65 = por %p63, %p64
      %p66 = scmp.le.s32.totalorder 1, %s11
      %p67 = scmp.lt.s32.totalorder %s11, 3
      %p68 = pnand %p66, %p67
      %p69 = pneg %p68
      // Predicated region
      $region9: #{tpu_custom_call.1} parent=5 // pred_check
        _
      $region10: #{tpu_custom_call.1} parent=5 // pred_check_branch
        %71 = sbr.rel (%p68) target = $region12
      $region11: #{tpu_custom_call.1} parent=5 // pred_region
        %s72 = ssub.s32 %s11, 1
      $region12: #{tpu_custom_call.1} parent=5 // pred_fallthru
        _
      %p73 = scmp.lt.s32.totalorder %s11, 2
      // Predicated region
      $region13: #{tpu_custom_call.1} parent=5 // pred_check
        %p74 = pneg %p73
      $region14: #{tpu_custom_call.1} parent=5 // pred_check_branch
        %76 = sbr.rel (%p74) target = $region16
      $region15: #{tpu_custom_call.1} parent=5 // pred_region
        // Predicated region
        $region17: #{tpu_custom_call.1} parent=15 // pred_check
          %p77 = pneg %p31
        $region18: #{tpu_custom_call.1} parent=15 // pred_check_branch
          %79 = sbr.rel (%p77) target = $region20
        $region19: #{tpu_custom_call.1} parent=15 // pred_region
          %s80 = sand.u32 %s21, 1
          %s81 = scalar_lea.sflag [#allocation3], %s80
          %s82 = sand.u32 %s21, 1
          %s83 = smul.addr %s82, 8
          %s84 = scalar_lea.vmem [#allocation2], %s83
          %86 = vsyncadd %s81, 0
          %s87 = smul.addr %s11, 2
          %s88 = smul.addr %s87, 4
          %s89 = scalar_lea.hbm %s0, %s88
          %s90 = sshll.u32 %s89, 4
          %s91 = int_to_ptr.hbm [resolvable:$true] %s90
          %s92 = sshll.u32 %s84, 4
          %s93 = int_to_ptr.vmem [resolvable:$true] %s92
          %98 = dma.hbm_to_vmem [thread:$0]  %s91, 128, %s93, %s81, 64, 64, 4
        $region20: #{tpu_custom_call.1} parent=15 // pred_fallthru
          _
      $region16: #{tpu_custom_call.1} parent=5 // pred_fallthru
        _
      %p99 = scmp.le.s32.totalorder 1, %s11
      %p100 = scmp.lt.s32.totalorder %s11, 3
      %p101 = pnand %p99, %p100
      %p102 = pneg %p101
      // Predicated region
      $region21: #{tpu_custom_call.1} parent=5 // pred_check
        _
      $region22: #{tpu_custom_call.1} parent=5 // pred_check_branch
        %104 = sbr.rel (%p101) target = $region24
      $region23: #{tpu_custom_call.1} parent=5 // pred_region
        %s105 = ssub.s32 %s11, 1
        %s106 = sand.u32 %s24, 1
        %s107 = scalar_lea.sflag [#allocation3], %s106
        %s108 = sand.u32 %s24, 1
        %s109 = smul.addr %s108, 8
        %s110 = scalar_lea.vmem [#allocation2], %s109
        // Predicated region
        $region25: #{tpu_custom_call.1} parent=23 // pred_check
          %p111 = pneg %p37
        $region26: #{tpu_custom_call.1} parent=23 // pred_check_branch
          %113 = sbr.rel (%p111) target = $region28
        $region27: #{tpu_custom_call.1} parent=23 // pred_region
          %115 = dma.done %s107, 128
        $region28: #{tpu_custom_call.1} parent=23 // pred_fallthru
          _
        %s116 = sand.u32 %s24, 1
        %s117 = scalar_lea.sflag [#allocation3], %s116
        %s118 = sand.u32 %s24, 1
        %s119 = smul.addr %s118, 8
        %s120 = scalar_lea.vmem [#allocation2], %s119
        %p121 = pneg %p37
        %p122 = pneg %p34
        %p123 = pneg %p58
        %p124 = pneg %p55
        %p125 = scmp.eq.s32.totalorder %s16, 0
        // Predicated region
        $region29: #{tpu_custom_call.1} parent=23 // pred_check
          %p126 = pneg %p125
        $region30: #{tpu_custom_call.1} parent=23 // pred_check_branch
          %128 = sbr.rel (%p126) target = $region32
        $region31: #{tpu_custom_call.1} parent=23 // pred_region
          %129 = vst [vmem:[#allocation5] sm:$0x3] 0.0
        $region32: #{tpu_custom_call.1} parent=23 // pred_fallthru
          _
        %v130 = vld [vmem:[%s110] sm:$0xf]
        %v131 = vld [vmem:[%s110 + $0x4] sm:$0xf]
        %v132 = vunpack.c.l.bf16 %v130
        %v133 = vunpack.c.l.bf16 %v131
        %v134 = vld [vmem:[#allocation5] sm:$0x3]
        %v135 = vadd.f32 %v132, %v133
        %v136 = vrot.slane %v135, 4
        %v137 = vadd.f32 %v135, %v136
        %v138 = vrot.slane %v137, 2
        %v139 = vadd.f32 %v137, %v138
        %v140 = vrot.slane %v139, 1
        %v141 = vadd.f32 %v139, %v140
        %v142 = vmul.f32 %v132, %v132
        %v143 = vmul.f32 %v133, %v133
        %v144 = vadd.f32 %v142, %v143
        %v145 = vrot.slane %v144, 4
        %v146 = vadd.f32 %v144, %v145
        %v147 = vrot.slane %v146, 2
        %v148 = vadd.f32 %v146, %v147
        %v149 = vrot.slane %v148, 1
        %v150 = vadd.f32 %v148, %v149
        %vm151 = vcmask 1040384
        %v152 = vsel %vm151, %v141, %v150
        %v153 = vadd.f32 %v134, %v152
        %154 = vst [vmem:[#allocation5] sm:$0x3] %v153
        // Predicated region
        $region33: #{tpu_custom_call.1} parent=23 // pred_check
          %p155 = pneg %p55
        $region34: #{tpu_custom_call.1} parent=23 // pred_check_branch
          %157 = sbr.rel (%p155) target = $region36
        $region35: #{tpu_custom_call.1} parent=23 // pred_region
          %159 = vsyncadd [#allocation4], 0
          %s161 = sshll.u32 [#allocation5], 4
          %s162 = int_to_ptr.vmem [resolvable:$true] %s161
          %s163 = sshll.u32 %s1, 4
          %s164 = int_to_ptr.hbm [resolvable:$true] %s163
          %166 = dma.vmem_to_hbm [thread:$0]  %s162, 32, %s164, [#allocation4]
        $region36: #{tpu_custom_call.1} parent=23 // pred_fallthru
          _
        // Predicated region
        $region37: #{tpu_custom_call.1} parent=23 // pred_check
          %p167 = pneg %p55
        $region38: #{tpu_custom_call.1} parent=23 // pred_check_branch
          %169 = sbr.rel (%p167) target = $region40
        $region39: #{tpu_custom_call.1} parent=23 // pred_region
          %171 = dma.done [#allocation4], 32
        $region40: #{tpu_custom_call.1} parent=23 // pred_fallthru
          _
      $region24: #{tpu_custom_call.1} parent=5 // pred_fallthru
        _
      %p172 = scmp.le.s32.totalorder 2, %s11
      // Predicated region
      $region41: #{tpu_custom_call.1} parent=5 // pred_check
        %p173 = pneg %p172
      $region42: #{tpu_custom_call.1} parent=5 // pred_check_branch
        %175 = sbr.rel (%p173) target = $region44
      $region43: #{tpu_custom_call.1} parent=5 // pred_region
        %s176 = ssub.s32 %s11, 2
      $region44: #{tpu_custom_call.1} parent=5 // pred_fallthru
        _
    $region6: #{tpu_custom_call.1} parent=1 // loop_footer
      %s15 = sadd.s32 1, %s11
    $region7: #{tpu_custom_call.1} parent=1 // loop_footer_branch
      %10 = sbr.rel target = $region3
    $region8: #{tpu_custom_call.1} parent=1 // loop_exit
      _
    %177 = vsyncpa [#allocation3], 1
    %s178 = scalar_lea.sflag [#allocation3], 1
    %179 = vsyncpa %s178, 1
    %180 = vsyncpa [#allocation4], 1
    %s181 = scalar_lea.sflag [#allocation4], 1
    %182 = vsyncpa %s181, 1

</llo_original>
